<compile_context>
chip_gen: v7x
topology: tpu7x:2x2x1
jax: 0.10.0
libtpu: 0.0.40
codegen_flags: <defaults>
</compile_context>

<pallas_src>
import functools

import jax
import jax.numpy as jnp
from jax.experimental import pallas as pl
from jax.experimental.pallas import tpu as pltpu


def _round_up(n: int, m: int) -> int:
    return ((n + m - 1) // m) * m


def _mlp_fused_kernel(*refs, num_layers: int):
    """Fused MLP: chain of Linear (+ReLU except last) on one batch tile.

    refs = (x_ref, w1_ref, b1_ref, w2_ref, b2_ref, ..., o_ref)
      x_ref : (BM, dims[0])          VMEM tile of the batch
      wi_ref: (dims[i-1], dims[i])   full weight (bf16), VMEM-resident
      bi_ref: (1, dims[i])           full bias (f32), VMEM-resident
      o_ref : (BM, dims[-1])         lane-dense output tile
    """
    x_ref = refs[0]
    o_ref = refs[-1]
    param_refs = refs[1:-1]

    h = x_ref[...]
    for i in range(num_layers):
        w = param_refs[2 * i][...]
        b = param_refs[2 * i + 1][...]
        # Feed the MXU in the weight dtype (bf16 = native MXU dtype on all
        # generations); accumulate in f32 and keep bias/ReLU on the f32 acc.
        h = jnp.dot(h.astype(w.dtype), w, preferred_element_type=jnp.float32) + b
        if i < num_layers - 1:
            h = jnp.maximum(h, 0.0)
    o_ref[...] = h.astype(o_ref.dtype)


def mlp_decoder_forward(x, params, *, block_m: int | None = None, out_dtype=None):
    """Forward pass matching MLPDecoder, as one fused pallas_call.

    params: list of (W, b) with W of shape (in, out) (bf16) and b of shape
    (1, out) (f32).  Only the batch axis is tiled; all weights/biases stay
    resident in VMEM.  `out_dtype` lets callers request a bf16 writeback.
    """
    B, in_dim = x.shape
    out_dim = params[-1][0].shape[1]
    num_layers = len(params)
    if out_dtype is None:
        out_dtype = x.dtype

    if block_m is None:
        if B <= 8:
            # Single full-extent tile (full-dim exception to the (8,128) rule).
            block_m = B
        else:
            # >= 2 grid steps so a megacore chip (v7x) can split the
            # "parallel" batch axis across both TensorCores; tiles up to 1024
            # rows amortize the ~0.35 us per-grid-step overhead while staying
            # far below every generation's scoped-VMEM default (incl. v5e's
            # 16 MiB).  Sweep block_m (and add vmem_limit_bytes) if you want
            # to push past ~2048.
            block_m = min(1024, _round_up(pl.cdiv(B, 2), 8))
    grid = (pl.cdiv(B, block_m),)

    in_specs = [pl.BlockSpec((block_m, in_dim), lambda i: (i, 0))]
    flat_params = []
    for w, b in params:
        in_specs.append(pl.BlockSpec(w.shape, lambda i: (0, 0)))  # resident
        in_specs.append(pl.BlockSpec(b.shape, lambda i: (0, 0)))  # resident
        flat_params.extend((w, b))

    kernel = functools.partial(_mlp_fused_kernel, num_layers=num_layers)
    return pl.pallas_call(
        kernel,
        out_shape=jax.ShapeDtypeStruct((B, out_dim), out_dtype),
        grid=grid,
        in_specs=in_specs,
        out_specs=pl.BlockSpec((block_m, out_dim), lambda i: (i, 0)),
        compiler_params=pltpu.CompilerParams(
            # Batch axis is independent -> parallel (megacore splits it).
            dimension_semantics=("parallel",),
        ),
    )(x, *flat_params)


def init_mlp_decoder_params(key, dims):
    """Init mirroring nn.Linear's U(-1/sqrt(fan_in), 1/sqrt(fan_in)).

    Returns list of (W, b): W of shape (in, out), stored bf16 (native MXU
    dtype); b of shape (1, out), kept f32 so the bias add happens on the f32
    accumulator inside the kernel.
    """
    params = []
    prev = dims[0]
    for nxt in dims[1:]:
        key, kw, kb = jax.random.split(key, 3)
        bound = 1.0 / jnp.sqrt(prev)
        w = jax.random.uniform(kw, (prev, nxt), jnp.float32, -bound, bound)
        b = jax.random.uniform(kb, (1, nxt), jnp.float32, -bound, bound)
        params.append((w.astype(jnp.bfloat16), b))
        prev = nxt
    return params


def mlp_decoder_reference(x, params):
    """Plain-JAX reference mirroring the kernel numerics (bf16 in, f32 acc)."""
    n = len(params)
    h = x
    for i, (w, b) in enumerate(params):
        h = jnp.dot(h.astype(w.dtype), w, preferred_element_type=jnp.float32) + b
        if i < n - 1:
            h = jnp.maximum(h, 0.0)
    return h.astype(x.dtype)


if __name__ == "__main__":
    # dims[0] = latent dim, dims[-1] = prod of origin dims (e.g. 1*16*16 = 256)
    dims = [32, 64, 128, 256]
    batch = 8

    key = jax.random.PRNGKey(0)
    key, kx = jax.random.split(key)
    x = jax.random.normal(kx, (batch, dims[0]), jnp.float32)

    params = init_mlp_decoder_params(key, dims)

    out = mlp_decoder_forward(x, params)
    out = jax.block_until_ready(out)

    ref = mlp_decoder_reference(x, params)
    assert out.shape == (batch, dims[-1])
    # bf16 MXU inputs loosen agreement vs an all-f32 chain to ~1e-2; the
    # reference here uses the same bf16 weights so the gap is accumulation
    # order only.
    assert jnp.allclose(out, ref, atol=1e-2, rtol=1e-2), "mismatch vs reference"

    print("KERNEL_OK")
</pallas_src>

<mosaic_0001>
module attributes {stable_mosaic.version = 11 : i64} {
  func.func @_mlp_fused_kernel(%arg0: i32, %arg1: memref<8x32xf32, #tpu.memory_space<vmem>>, %arg2: memref<32x64xbf16, #tpu.memory_space<vmem>>, %arg3: memref<1x64xf32, #tpu.memory_space<vmem>>, %arg4: memref<64x128xbf16, #tpu.memory_space<vmem>>, %arg5: memref<1x128xf32, #tpu.memory_space<vmem>>, %arg6: memref<128x256xbf16, #tpu.memory_space<vmem>>, %arg7: memref<1x256xf32, #tpu.memory_space<vmem>>, %arg8: memref<8x256xf32, #tpu.memory_space<vmem>>) attributes {dimension_semantics = [#tpu.dimension_semantics<parallel>], iteration_bounds = array<i64: 1>, scalar_prefetch = 0 : i64, scratch_operands = 0 : i64, tpu.core_type = #tpu.core_type<tc>, window_params = [{transform_indices = @transform_0, window_bounds = array<i64: 8, 32>}, {pipeline_mode = #tpu.pipeline_mode<synchronous>, transform_indices = @transform_1, window_bounds = array<i64: 32, 64>}, {pipeline_mode = #tpu.pipeline_mode<synchronous>, transform_indices = @transform_2, window_bounds = array<i64: 1, 64>}, {pipeline_mode = #tpu.pipeline_mode<synchronous>, transform_indices = @transform_3, window_bounds = array<i64: 64, 128>}, {pipeline_mode = #tpu.pipeline_mode<synchronous>, transform_indices = @transform_4, window_bounds = array<i64: 1, 128>}, {pipeline_mode = #tpu.pipeline_mode<synchronous>, transform_indices = @transform_5, window_bounds = array<i64: 128, 256>}, {pipeline_mode = #tpu.pipeline_mode<synchronous>, transform_indices = @transform_6, window_bounds = array<i64: 1, 256>}, {transform_indices = @transform_7, window_bounds = array<i64: 8, 256>}]} {
    %c0 = arith.constant 0 : index
    %c0_0 = arith.constant 0 : index
    %0 = vector.load %arg1[%c0, %c0_0] : memref<8x32xf32, #tpu.memory_space<vmem>>, vector<8x32xf32>
    %c0_1 = arith.constant 0 : index
    %c0_2 = arith.constant 0 : index
    %1 = vector.load %arg2[%c0_1, %c0_2] : memref<32x64xbf16, #tpu.memory_space<vmem>>, vector<32x64xbf16>
    %c0_3 = arith.constant 0 : index
    %c0_4 = arith.constant 0 : index
    %2 = vector.load %arg3[%c0_3, %c0_4] : memref<1x64xf32, #tpu.memory_space<vmem>>, vector<1x64xf32>
    %3 = arith.truncf %0 : vector<8x32xf32> to vector<8x32xbf16>
    %cst = arith.constant dense<0.000000e+00> : vector<8x64xf32>
    %4 = tpu.matmul %3, %1, %cst {dimension_numbers = #tpu.dot_dimension_numbers<[1], [0], [0], [1], [0, 0, 1, 1], [], []>} : vector<8x32xbf16>, vector<32x64xbf16>, vector<8x64xf32> -> vector<8x64xf32>
    %5 = vector.broadcast %2 : vector<1x64xf32> to vector<8x64xf32>
    %6 = arith.addf %4, %5 : vector<8x64xf32>
    %cst_5 = arith.constant 0.000000e+00 : f32
    %7 = vector.broadcast %cst_5 : f32 to vector<8x64xf32>
    %8 = arith.maximumf %6, %7 : vector<8x64xf32>
    %c0_6 = arith.constant 0 : index
    %c0_7 = arith.constant 0 : index
    %9 = vector.load %arg4[%c0_6, %c0_7] : memref<64x128xbf16, #tpu.memory_space<vmem>>, vector<64x128xbf16>
    %c0_8 = arith.constant 0 : index
    %c0_9 = arith.constant 0 : index
    %10 = vector.load %arg5[%c0_8, %c0_9] : memref<1x128xf32, #tpu.memory_space<vmem>>, vector<1x128xf32>
    %11 = arith.truncf %8 : vector<8x64xf32> to vector<8x64xbf16>
    %cst_10 = arith.constant dense<0.000000e+00> : vector<8x128xf32>
    %12 = tpu.matmul %11, %9, %cst_10 {dimension_numbers = #tpu.dot_dimension_numbers<[1], [0], [0], [1], [0, 0, 1, 1], [], []>} : vector<8x64xbf16>, vector<64x128xbf16>, vector<8x128xf32> -> vector<8x128xf32>
    %13 = vector.broadcast %10 : vector<1x128xf32> to vector<8x128xf32>
    %14 = arith.addf %12, %13 : vector<8x128xf32>
    %cst_11 = arith.constant 0.000000e+00 : f32
    %15 = vector.broadcast %cst_11 : f32 to vector<8x128xf32>
    %16 = arith.maximumf %14, %15 : vector<8x128xf32>
    %c0_12 = arith.constant 0 : index
    %c0_13 = arith.constant 0 : index
    %17 = vector.load %arg6[%c0_12, %c0_13] : memref<128x256xbf16, #tpu.memory_space<vmem>>, vector<128x256xbf16>
    %c0_14 = arith.constant 0 : index
    %c0_15 = arith.constant 0 : index
    %18 = vector.load %arg7[%c0_14, %c0_15] : memref<1x256xf32, #tpu.memory_space<vmem>>, vector<1x256xf32>
    %19 = arith.truncf %16 : vector<8x128xf32> to vector<8x128xbf16>
    %cst_16 = arith.constant dense<0.000000e+00> : vector<8x256xf32>
    %20 = tpu.matmul %19, %17, %cst_16 {dimension_numbers = #tpu.dot_dimension_numbers<[1], [0], [0], [1], [0, 0, 1, 1], [], []>} : vector<8x128xbf16>, vector<128x256xbf16>, vector<8x256xf32> -> vector<8x256xf32>
    %21 = vector.broadcast %18 : vector<1x256xf32> to vector<8x256xf32>
    %22 = arith.addf %20, %21 : vector<8x256xf32>
    %c0_17 = arith.constant 0 : index
    %c0_18 = arith.constant 0 : index
    %23 = vector.load %arg8[%c0_17, %c0_18] : memref<8x256xf32, #tpu.memory_space<vmem>>, vector<8x256xf32>
    tpu.vector_store %arg8[%c0_17, %c0_18], %22 {strides = array<i32>} : memref<8x256xf32, #tpu.memory_space<vmem>>, vector<8x256xf32>,
    return
  }
  func.func @transform_0(%arg0: i32) -> (i32, i32) {
    %c0_i32 = arith.constant 0 : i32
    %c0_i32_0 = arith.constant 0 : i32
    return %arg0, %c0_i32 : i32, i32
  }
  func.func @transform_1(%arg0: i32) -> (i32, i32) {
    %c0_i32 = arith.constant 0 : i32
    %c0_i32_0 = arith.constant 0 : i32
    %c0_i32_1 = arith.constant 0 : i32
    return %c0_i32, %c0_i32_0 : i32, i32
  }
  func.func @transform_2(%arg0: i32) -> (i32, i32) {
    %c0_i32 = arith.constant 0 : i32
    %c0_i32_0 = arith.constant 0 : i32
    %c0_i32_1 = arith.constant 0 : i32
    return %c0_i32, %c0_i32_0 : i32, i32
  }
  func.func @transform_3(%arg0: i32) -> (i32, i32) {
    %c0_i32 = arith.constant 0 : i32
    %c0_i32_0 = arith.constant 0 : i32
    %c0_i32_1 = arith.constant 0 : i32
    return %c0_i32, %c0_i32_0 : i32, i32
  }
  func.func @transform_4(%arg0: i32) -> (i32, i32) {
    %c0_i32 = arith.constant 0 : i32
    %c0_i32_0 = arith.constant 0 : i32
    %c0_i32_1 = arith.constant 0 : i32
    return %c0_i32, %c0_i32_0 : i32, i32
  }
  func.func @transform_5(%arg0: i32) -> (i32, i32) {
    %c0_i32 = arith.constant 0 : i32
    %c0_i32_0 = arith.constant 0 : i32
    %c0_i32_1 = arith.constant 0 : i32
    return %c0_i32, %c0_i32_0 : i32, i32
  }
  func.func @transform_6(%arg0: i32) -> (i32, i32) {
    %c0_i32 = arith.constant 0 : i32
    %c0_i32_0 = arith.constant 0 : i32
    %c0_i32_1 = arith.constant 0 : i32
    return %c0_i32, %c0_i32_0 : i32, i32
  }
  func.func @transform_7(%arg0: i32) -> (i32, i32) {
    %c0_i32 = arith.constant 0 : i32
    %c0_i32_0 = arith.constant 0 : i32
    return %arg0, %c0_i32 : i32, i32
  }
}

</mosaic_0001>

<llo_original>
// kernel: tpu_custom_call.1
$region0: #{tpu_custom_call.1}
  #allocation0 [shape = 'u32[]', space=smem, size = 0x4, offset = 0x4, fixed_abs, tag = 'smem constant byte address 0x4 - core index']
  #allocation1 [shape = 'u32[144,128]{1,0:T(1,128)}', space=vmem, size = 0x12000, scoped, tag = 'internal scratch']
  %s0 = inlined_call_operand.hbm [shape: f32[8,32], index: 0, kind: input, shape index: {}]
  %s1 = inlined_call_operand.hbm [shape: bf16[32,64], index: 1, kind: input, shape index: {}]
  %s2 = inlined_call_operand.vmem [shape: f32[1,64], index: 2, kind: input, shape index: {}]
  %s3 = inlined_call_operand.hbm [shape: bf16[64,128], index: 3, kind: input, shape index: {}]
  %s4 = inlined_call_operand.vmem [shape: f32[1,128], index: 4, kind: input, shape index: {}]
  %s5 = inlined_call_operand.hbm [shape: bf16[128,256], index: 5, kind: input, shape index: {}]
  %s6 = inlined_call_operand.vmem [shape: f32[1,256], index: 6, kind: input, shape index: {}]
  %s7 = inlined_call_operand.hbm [shape: f32[8,256], index: 7, kind: output, shape index: {}]
  %s8 = sld [smem:[#allocation0]]
  $region54: #{tpu_custom_call.1} parent=0
    _
  %s10 = ssub.s32 1, %s8
  %s11 = scalar_select 0, %s10, %s8
  $region1: #{tpu_custom_call.1} parent=0
    #allocation2 [shape = 'u8[4096]{0}', space=vmem, size = 0x1000, scoped, tag = 'input window, operand 0, single buffered']
    #allocation3 [shape = 's32[1]{0}', space=sflag, size = 0x4, scoped, tag = 'scoped memory for tpu_custom_call.1']
    #allocation4 [shape = 's32[1]{0}', space=sflag, size = 0x4, scoped, tag = 'scoped memory for tpu_custom_call.1']
    #allocation5 [shape = 'u8[8192]{0}', space=vmem, size = 0x2000, scoped, tag = 'input window, operand 1, single buffered']
    #allocation6 [shape = 's32[1]{0}', space=sflag, size = 0x4, scoped, tag = 'scoped memory for tpu_custom_call.1']
    #allocation7 [shape = 'u8[16384]{0}', space=vmem, size = 0x4000, scoped, tag = 'input window, operand 3, single buffered']
    #allocation8 [shape = 'u8[65536]{0}', space=vmem, size = 0x10000, scoped, tag = 'input window, operand 5, single buffered']
    #allocation9 [shape = 's32[1]{0}', space=sflag, size = 0x4, scoped, tag = 'scoped memory for tpu_custom_call.1']
    #allocation10 [shape = 'u8[8192]{0}', space=vmem, size = 0x2000, scoped, tag = 'output window, operand 0, single buffered']
    %12 = vsyncpa [#allocation3], 0
    %13 = vsyncpa [#allocation6], 0
    %14 = vsyncpa [#allocation9], 0
    %15 = vsyncpa [#allocation4], 0
    // Predicated region
    $region2: #{tpu_custom_call.1} parent=1 // pred_check
      _
    $region3: #{tpu_custom_call.1} parent=1 // pred_check_branch
      %17 = sbr.rel (0) target = $region5
    $region4: #{tpu_custom_call.1} parent=1 // pred_region
      %s19 = ssub.s32 128, 128
      %20 = vsyncadd [#allocation3], %s19
      %s22 = sshll.u32 [#allocation2], 4
      %s23 = int_to_ptr.vmem [resolvable:$true] %s22
      %25 = dma.hbm_to_vmem [thread:$0]  %s0, 128, %s23, [#allocation3]
    $region5: #{tpu_custom_call.1} parent=1 // pred_fallthru
      _
    // Predicated region
    $region6: #{tpu_custom_call.1} parent=1 // pred_check
      _
    $region7: #{tpu_custom_call.1} parent=1 // pred_check_branch
      %27 = sbr.rel (0) target = $region9
    $region8: #{tpu_custom_call.1} parent=1 // pred_region
      %s29 = ssub.s32 256, 256
      %30 = vsyncadd [#allocation6], %s29
      %s31 = sshll.u32 [#allocation5], 4
      %s32 = int_to_ptr.vmem [resolvable:$true] %s31
      %37 = dma.hbm_to_vmem [thread:$0]  %s1, 256, %s32, [#allocation6], 64, 64, 4
    $region9: #{tpu_custom_call.1} parent=1 // pred_fallthru
      _
    // Predicated region
    $region10: #{tpu_custom_call.1} parent=1 // pred_check
      _
    $region11: #{tpu_custom_call.1} parent=1 // pred_check_branch
      %39 = sbr.rel (0) target = $region13
    $region12: #{tpu_custom_call.1} parent=1 // pred_region
      _
    $region13: #{tpu_custom_call.1} parent=1 // pred_fallthru
      _
    // Predicated region
    $region14: #{tpu_custom_call.1} parent=1 // pred_check
      _
    $region15: #{tpu_custom_call.1} parent=1 // pred_check_branch
      %41 = sbr.rel (0) target = $region17
    $region16: #{tpu_custom_call.1} parent=1 // pred_region
      %s43 = ssub.s32 512, 512
      %44 = vsyncadd [#allocation6], %s43
      %s45 = sshll.u32 [#allocation7], 4
      %s46 = int_to_ptr.vmem [resolvable:$true] %s45
      %51 = dma.hbm_to_vmem [thread:$0]  %s3, 512, %s46, [#allocation6], 64, 64, 4
    $region17: #{tpu_custom_call.1} parent=1 // pred_fallthru
      _
    // Predicated region
    $region18: #{tpu_custom_call.1} parent=1 // pred_check
      _
    $region19: #{tpu_custom_call.1} parent=1 // pred_check_branch
      %53 = sbr.rel (0) target = $region21
    $region20: #{tpu_custom_call.1} parent=1 // pred_region
      _
    $region21: #{tpu_custom_call.1} parent=1 // pred_fallthru
      _
    // Predicated region
    $region22: #{tpu_custom_call.1} parent=1 // pred_check
      _
    $region23: #{tpu_custom_call.1} parent=1 // pred_check_branch
      %55 = sbr.rel (0) target = $region25
    $region24: #{tpu_custom_call.1} parent=1 // pred_region
      %s57 = ssub.s32 2048, 2048
      %58 = vsyncadd [#allocation9], %s57
      %s59 = sshll.u32 [#allocation8], 4
      %s60 = int_to_ptr.vmem [resolvable:$true] %s59
      %65 = dma.hbm_to_vmem [thread:$0]  %s5, 2048, %s60, [#allocation9], 128, 128, 8
    $region25: #{tpu_custom_call.1} parent=1 // pred_fallthru
      _
    // Predicated region
    $region26: #{tpu_custom_call.1} parent=1 // pred_check
      _
    $region27: #{tpu_custom_call.1} parent=1 // pred_check_branch
      %67 = sbr.rel (0) target = $region29
    $region28: #{tpu_custom_call.1} parent=1 // pred_region
      _
    $region29: #{tpu_custom_call.1} parent=1 // pred_fallthru
      _
    // Predicated region
    $region30: #{tpu_custom_call.1} parent=1 // pred_check
      _
    $region31: #{tpu_custom_call.1} parent=1 // pred_check_branch
      %69 = sbr.rel (0) target = $region33
    $region32: #{tpu_custom_call.1} parent=1 // pred_region
      %70 = dma.done [#allocation3], 128
    $region33: #{tpu_custom_call.1} parent=1 // pred_fallthru
      _
    // Predicated region
    $region34: #{tpu_custom_call.1} parent=1 // pred_check
      _
    $region35: #{tpu_custom_call.1} parent=1 // pred_check_branch
      %72 = sbr.rel (0) target = $region37
    $region36: #{tpu_custom_call.1} parent=1 // pred_region
      %73 = dma.done [#allocation6], 256
    $region37: #{tpu_custom_call.1} parent=1 // pred_fallthru
      _
    // Predicated region
    $region38: #{tpu_custom_call.1} parent=1 // pred_check
      _
    $region39: #{tpu_custom_call.1} parent=1 // pred_check_branch
      %75 = sbr.rel (0) target = $region41
    $region40: #{tpu_custom_call.1} parent=1 // pred_region
      %76 = dma.done [#allocation6], 512
    $region41: #{tpu_custom_call.1} parent=1 // pred_fallthru
      _
    // Predicated region
    $region42: #{tpu_custom_call.1} parent=1 // pred_check
      _
    $region43: #{tpu_custom_call.1} parent=1 // pred_check_branch
      %78 = sbr.rel (0) target = $region45
    $region44: #{tpu_custom_call.1} parent=1 // pred_region
      %79 = dma.done [#allocation9], 2048
    $region45: #{tpu_custom_call.1} parent=1 // pred_fallthru
      _
    %v81 = vld [vmem:[#allocation2] sm:$0xff]
    %v82 = vld [vmem:[#allocation5] sm:$0xf]
    %v83 = vld [vmem:[#allocation5 + $0x4] sm:$0xf]
    %v84 = vld [vmem:[#allocation5 + $0x8] sm:$0xf]
    %v85 = vld [vmem:[#allocation5 + $0xc] sm:$0xf]
    %v86 = vld [vmem:[%s2] sm:$0x1]
    %v87 = vpack.c.bf16 %v81, %v81
    %v89 = vlaneseq
    %v90 = vshrl.u32 %v89, 7
    %v91 = vsub.s32 0, %v90
    %v92 = vrot.slane %v86, %v91
    %v98 = vunpack.c.l.b16 %v82
    %v99 = vunpack.c.l.b16 %v83
    %v100 = vunpack.c.l.b16 %v84
    %v101 = vunpack.c.l.b16 %v85
    %v102 = vpack.c.b16 %v99, %v98
    %v103 = vpack.c.b16 %v101, %v100
    %vm106 = vcmask 261120
    %v108 = vsel %vm106, %v87, 0
    %110 = vmatprep.subr.bf16.mxu0 0
    %111 = vmatpush1.bf16.msra.mxu0 %v102
    %112 = vmatprep.subr.bf16.mxu0 0
    %113 = vmatpush1.bf16.msra.mxu0 %v103
    %114 = vmatprep.subr.bf16.mxu0 0
    %115 = vmatpush1.bf16.msra.mxu0 0
    %116 = vmatprep.subr.bf16.mxu0 0
    %117 = vmatpush1.bf16.msra.mxu0 0
    %118 = vmatprep.subr.bf16.mxu0 0
    %119 = vmatpush1.bf16.msra.mxu0 0
    %120 = vmatprep.subr.bf16.mxu0 0
    %121 = vmatpush1.bf16.msra.mxu0 0
    %122 = vmatprep.subr.bf16.mxu0 0
    %123 = vmatpush1.bf16.msra.mxu0 0
    %124 = vmatprep.subr.bf16.mxu0 0
    %125 = vmatpush1.bf16.msra.mxu0 0
    %126 = vmatprep.subr.bf16.mxu0 0
    %127 = vmatpush1.bf16.msra.mxu0 0
    %128 = vmatprep.subr.bf16.mxu0 0
    %129 = vmatpush1.bf16.msra.mxu0 0
    %130 = vmatprep.subr.bf16.mxu0 0
    %131 = vmatpush1.bf16.msra.mxu0 0
    %132 = vmatprep.subr.bf16.mxu0 0
    %133 = vmatpush1.bf16.msra.mxu0 0
    %134 = vmatprep.subr.bf16.mxu0 0
    %135 = vmatpush1.bf16.msra.mxu0 0
    %136 = vmatprep.subr.bf16.mxu0 0
    %137 = vmatpush1.bf16.msra.mxu0 0
    %138 = vmatprep.subr.bf16.mxu0 0
    %139 = vmatpush1.bf16.msra.mxu0 0
    %140 = vmatprep.subr.bf16.mxu0 0
    %141 = vmatpush1.bf16.msra.mxu0 0
    %142 = vmatprep.mubr.bf16.mxu0 0
    %143 = vmatmul.mubr.bf16.gmra.mrb[0].mxu0 %v108
    %v144 = vpop.f32.mrb[0].mxu0
    %v145 = vadd.f32 %v92, %v144
    %v146 = vpop.f32.mrb[0].mxu0
    %v147 = vpop.f32.mrb[0].mxu0
    %v148 = vpop.f32.mrb[0].mxu0
    %149 = vdwg.mxu0
    %v150 = vmax.f32 %v145, 0.0
    %v151 = vld [vmem:[#allocation7] sm:$0xf]
    %v152 = vld [vmem:[#allocation7 + $0x4] sm:$0xf]
    %v153 = vld [vmem:[#allocation7 + $0x8] sm:$0xf]
    %v154 = vld [vmem:[#allocation7 + $0xc] sm:$0xf]
    %v155 = vld [vmem:[#allocation7 + $0x10] sm:$0xf]
    %v156 = vld [vmem:[#allocation7 + $0x14] sm:$0xf]
    %v157 = vld [vmem:[#allocation7 + $0x18] sm:$0xf]
    %v158 = vld [vmem:[#allocation7 + $0x1c] sm:$0xf]
    %v159 = vld [vmem:[%s4] sm:$0x1]
    %v160 = vpack.c.bf16 %v150, %v150
    %v162 = vlaneseq
    %v163 = vshrl.u32 %v162, 7
    %v164 = vsub.s32 0, %v163
    %v165 = vrot.slane %v159, %v164
    %v175 = vunpack.c.l.b16 %v151
    %v176 = vunpack.c.l.b16 %v152
    %v177 = vunpack.c.l.b16 %v153
    %v178 = vunpack.c.l.b16 %v154
    %v179 = vunpack.c.l.b16 %v155
    %v180 = vunpack.c.l.b16 %v156
    %v181 = vunpack.c.l.b16 %v157
    %v182 = vunpack.c.l.b16 %v158
    %v183 = vpack.c.b16 %v176, %v175
    %v184 = vpack.c.b16 %v178, %v177
    %v185 = vpack.c.b16 %v180, %v179
    %v186 = vpack.c.b16 %v182, %v181
    %vm191 = vcmask 523264
    %v193 = vsel %vm191, %v160, 0
    %195 = vmatprep.subr.bf16.mxu0 0
    %196 = vmatpush1.bf16.msra.mxu0 %v183
    %197 = vmatprep.subr.bf16.mxu0 0
    %198 = vmatpush1.bf16.msra.mxu0 %v184
    %199 = vmatprep.subr.bf16.mxu0 0
    %200 = vmatpush1.bf16.msra.mxu0 %v185
    %201 = vmatprep.subr.bf16.mxu0 0
    %202 = vmatpush1.bf16.msra.mxu0 %v186
    %203 = vmatprep.subr.bf16.mxu0 0
    %204 = vmatpush1.bf16.msra.mxu0 0
    %205 = vmatprep.subr.bf16.mxu0 0
    %206 = vmatpush1.bf16.msra.mxu0 0
    %207 = vmatprep.subr.bf16.mxu0 0
    %208 = vmatpush1.bf16.msra.mxu0 0
    %209 = vmatprep.subr.bf16.mxu0 0
    %210 = vmatpush1.bf16.msra.mxu0 0
    %211 = vmatprep.subr.bf16.mxu0 0
    %212 = vmatpush1.bf16.msra.mxu0 0
    %213 = vmatprep.subr.bf16.mxu0 0
    %214 = vmatpush1.bf16.msra.mxu0 0
    %215 = vmatprep.subr.bf16.mxu0 0
    %216 = vmatpush1.bf16.msra.mxu0 0
    %217 = vmatprep.subr.bf16.mxu0 0
    %218 = vmatpush1.bf16.msra.mxu0 0
    %219 = vmatprep.subr.bf16.mxu0 0
    %220 = vmatpush1.bf16.msra.mxu0 0
    %221 = vmatprep.subr.bf16.mxu0 0
    %222 = vmatpush1.bf16.msra.mxu0 0
    %223 = vmatprep.subr.bf16.mxu0 0
    %224 = vmatpush1.bf16.msra.mxu0 0
    %225 = vmatprep.subr.bf16.mxu0 0
    %226 = vmatpush1.bf16.msra.mxu0 0
    %227 = vmatprep.mubr.bf16.mxu0 0
    %228 = vmatmul.mubr.bf16.gmra.mrb[0].mxu0 %v193
    %v229 = vpop.f32.mrb[0].mxu0
    %v230 = vadd.f32 %v165, %v229
    %v231 = vpop.f32.mrb[0].mxu0
    %v232 = vpop.f32.mrb[0].mxu0
    %v233 = vpop.f32.mrb[0].mxu0
    %234 = vdwg.mxu0
    %v235 = vmax.f32 %v230, 0.0
    %v236 = vld [vmem:[#allocation8] sm:$0xff]
    %v237 = vld [vmem:[#allocation8 + $0x8] sm:$0xff]
    %v238 = vld [vmem:[#allocation8 + $0x10] sm:$0xff]
    %v239 = vld [vmem:[#allocation8 + $0x18] sm:$0xff]
    %v240 = vld [vmem:[#allocation8 + $0x20] sm:$0xff]
    %v241 = vld [vmem:[#allocation8 + $0x28] sm:$0xff]
    %v242 = vld [vmem:[#allocation8 + $0x30] sm:$0xff]
    %v243 = vld [vmem:[#allocation8 + $0x38] sm:$0xff]
    %v244 = vld [vmem:[#allocation8 + $0x40] sm:$0xff]
    %v245 = vld [vmem:[#allocation8 + $0x48] sm:$0xff]
    %v246 = vld [vmem:[#allocation8 + $0x50] sm:$0xff]
    %v247 = vld [vmem:[#allocation8 + $0x58] sm:$0xff]
    %v248 = vld [vmem:[#allocation8 + $0x60] sm:$0xff]
    %v249 = vld [vmem:[#allocation8 + $0x68] sm:$0xff]
    %v250 = vld [vmem:[#allocation8 + $0x70] sm:$0xff]
    %v251 = vld [vmem:[#allocation8 + $0x78] sm:$0xff]
    %v252 = vld [vmem:[%s6] sm:$0x3]
    %v253 = vpack.c.bf16 %v235, %v235
    %v255 = vlaneseq
    %v256 = vshrl.u32 %v255, 7
    %v257 = vsub.s32 0, %v256
    %v258 = vrot.slane %v252, %v257
    %v259 = vlaneseq
    %v260 = vshrl.u32 %v259, 7
    %v261 = vsub.s32 1, %v260
    %v262 = vrot.slane %v252, %v261
    %v281 = vunpack.c.l.b16 %v236
    %v282 = vunpack.c.h.b16 %v236
    %v283 = vunpack.c.l.b16 %v237
    %v284 = vunpack.c.h.b16 %v237
    %v285 = vunpack.c.l.b16 %v238
    %v286 = vunpack.c.h.b16 %v238
    %v287 = vunpack.c.l.b16 %v239
    %v288 = vunpack.c.h.b16 %v239
    %v289 = vunpack.c.l.b16 %v240
    %v290 = vunpack.c.h.b16 %v240
    %v291 = vunpack.c.l.b16 %v241
    %v292 = vunpack.c.h.b16 %v241
    %v293 = vunpack.c.l.b16 %v242
    %v294 = vunpack.c.h.b16 %v242
    %v295 = vunpack.c.l.b16 %v243
    %v296 = vunpack.c.h.b16 %v243
    %v297 = vunpack.c.l.b16 %v244
    %v298 = vunpack.c.h.b16 %v244
    %v299 = vunpack.c.l.b16 %v245
    %v300 = vunpack.c.h.b16 %v245
    %v301 = vunpack.c.l.b16 %v246
    %v302 = vunpack.c.h.b16 %v246
    %v303 = vunpack.c.l.b16 %v247
    %v304 = vunpack.c.h.b16 %v247
    %v305 = vunpack.c.l.b16 %v248
    %v306 = vunpack.c.h.b16 %v248
    %v307 = vunpack.c.l.b16 %v249
    %v308 = vunpack.c.h.b16 %v249
    %v309 = vunpack.c.l.b16 %v250
    %v310 = vunpack.c.h.b16 %v250
    %v311 = vunpack.c.l.b16 %v251
    %v312 = vunpack.c.h.b16 %v251
    %v313 = vpack.c.b16 %v283, %v281
    %v314 = vpack.c.b16 %v284, %v282
    %v315 = vpack.c.b16 %v287, %v285
    %v316 = vpack.c.b16 %v288, %v286
    %v317 = vpack.c.b16 %v291, %v289
    %v318 = vpack.c.b16 %v292, %v290
    %v319 = vpack.c.b16 %v295, %v293
    %v320 = vpack.c.b16 %v296, %v294
    %v321 = vpack.c.b16 %v299, %v297
    %v322 = vpack.c.b16 %v300, %v298
    %v323 = vpack.c.b16 %v303, %v301
    %v324 = vpack.c.b16 %v304, %v302
    %v325 = vpack.c.b16 %v307, %v305
    %v326 = vpack.c.b16 %v308, %v306
    %v327 = vpack.c.b16 %v311, %v309
    %v328 = vpack.c.b16 %v312, %v310
    %345 = vmatprep.subr.bf16.mxu0 %v314
    %346 = vmatpush1.bf16.msra.mxu0 %v313
    %347 = vmatprep.subr.bf16.mxu0 %v316
    %348 = vmatpush1.bf16.msra.mxu0 %v315
    %349 = vmatprep.subr.bf16.mxu0 %v318
    %350 = vmatpush1.bf16.msra.mxu0 %v317
    %351 = vmatprep.subr.bf16.mxu0 %v320
    %352 = vmatpush1.bf16.msra.mxu0 %v319
    %353 = vmatprep.subr.bf16.mxu0 %v322
    %354 = vmatpush1.bf16.msra.mxu0 %v321
    %355 = vmatprep.subr.bf16.mxu0 %v324
    %356 = vmatpush1.bf16.msra.mxu0 %v323
    %357 = vmatprep.subr.bf16.mxu0 %v326
    %358 = vmatpush1.bf16.msra.mxu0 %v325
    %359 = vmatprep.subr.bf16.mxu0 %v328
    %360 = vmatpush1.bf16.msra.mxu0 %v327
    %361 = vmatprep.subr.bf16.mxu0 0
    %362 = vmatpush1.bf16.msra.mxu0 0
    %363 = vmatprep.subr.bf16.mxu0 0
    %364 = vmatpush1.bf16.msra.mxu0 0
    %365 = vmatprep.subr.bf16.mxu0 0
    %366 = vmatpush1.bf16.msra.mxu0 0
    %367 = vmatprep.subr.bf16.mxu0 0
    %368 = vmatpush1.bf16.msra.mxu0 0
    %369 = vmatprep.subr.bf16.mxu0 0
    %370 = vmatpush1.bf16.msra.mxu0 0
    %371 = vmatprep.subr.bf16.mxu0 0
    %372 = vmatpush1.bf16.msra.mxu0 0
    %373 = vmatprep.subr.bf16.mxu0 0
    %374 = vmatpush1.bf16.msra.mxu0 0
    %375 = vmatprep.subr.bf16.mxu0 0
    %376 = vmatpush1.bf16.msra.mxu0 0
    %377 = vmatprep.mubr.bf16.mxu0 0
    %378 = vmatmul.mubr.bf16.gmra.mrb[0].mxu0 %v253
    %v379 = vpop.f32.mrb[0].mxu0
    %v380 = vadd.f32 %v258, %v379
    %v381 = vpop.f32.mrb[0].mxu0
    %v382 = vadd.f32 %v262, %v381
    %v383 = vpop.f32.mrb[0].mxu0
    %v384 = vpop.f32.mrb[0].mxu0
    %385 = vdwg.mxu0
    %386 = vst [vmem:[#allocation10] sm:$0xff] %v380
    %387 = vst [vmem:[#allocation10 + $0x8] sm:$0xff] %v382
    // Predicated region
    $region46: #{tpu_custom_call.1} parent=1 // pred_check
      _
    $region47: #{tpu_custom_call.1} parent=1 // pred_check_branch
      %389 = sbr.rel (0) target = $region49
    $region48: #{tpu_custom_call.1} parent=1 // pred_region
      %s391 = ssub.s32 256, 256
      %392 = vsyncadd [#allocation4], %s391
      %s394 = sshll.u32 [#allocation10], 4
      %s395 = int_to_ptr.vmem [resolvable:$true] %s394
      %397 = dma.vmem_to_hbm [thread:$0]  %s395, 256, %s7, [#allocation4]
    $region49: #{tpu_custom_call.1} parent=1 // pred_fallthru
      _
    // Predicated region
    $region50: #{tpu_custom_call.1} parent=1 // pred_check
      _
    $region51: #{tpu_custom_call.1} parent=1 // pred_check_branch
      %399 = sbr.rel (0) target = $region53
    $region52: #{tpu_custom_call.1} parent=1 // pred_region
      %400 = dma.done [#allocation4], 256
    $region53: #{tpu_custom_call.1} parent=1 // pred_fallthru
      _
    %401 = vsyncpa [#allocation3], 1
    %402 = vsyncpa [#allocation6], 1
    %403 = vsyncpa [#allocation9], 1
    %404 = vsyncpa [#allocation4], 1

</llo_original>
